<compile_context>
chip_gen: v7x
topology: tpu7x:2x2x1
jax: 0.10.0
libtpu: 0.0.40
codegen_flags: <defaults>
</compile_context>

<pallas_src>
import jax
import jax.numpy as jnp
from jax import lax
from jax.experimental import pallas as pl
from jax.experimental.pallas import tpu as pltpu

_EPS = 1e-6

# Fixed (non-trainable) stencil weights from the module's __init__ (used only
# by the pure-JAX reference; the kernel implements them as shifted diffs).
KERNEL_V = jnp.array([[0., -1., 0.], [0., 0., 0.], [0., 1., 0.]], jnp.float32)
KERNEL_H = jnp.array([[0., 0., 0.], [-1., 0., 1.], [0., 0., 0.]], jnp.float32)


def _cdiv(a, b):
    return -(-a // b)


def _round_up(a, b):
    return _cdiv(a, b) * b


def _make_kernel(nb, img_h, img_w, tho):
    """Kernel factory; all sizes are static Python ints."""
    w = img_w

    def kernel(x_ref, o_ref, z_ref):
        # x_ref: (nb, 3, tho, w)      input rows [r0, r0+tho)  (partial/clamped
        #                             blocks are masked to zero below)
        # o_ref: (nb, 3, tho, w+2)    output rows [r0, r0+tho)
        # z_ref: (nb, 3, tho+2, w+4)  zero-extended image rows [r0-2, r0+tho),
        #                             columns shifted by +2 (cols 0,1 and
        #                             w+2,w+3 are permanent zero flanks)
        t = pl.program_id(1)
        r0 = t * tho

        # Top halo rows (xg rows r0-2, r0-1): zeros for the first tile of an
        # image, otherwise carried from the previous tile's staging buffer.
        @pl.when(t == 0)
        def _():
            z_ref[:, :, 0:2, :] = jnp.zeros((nb, 3, 2, w + 4), jnp.float32)

        @pl.when(t > 0)
        def _():
            z_ref[:, :, 0:2, :] = z_ref[:, :, tho:tho + 2, :]

        # Zero flank columns (thin strips only; never written with data).
        z_ref[:, :, :, 0:2] = jnp.zeros((nb, 3, tho + 2, 2), jnp.float32)
        z_ref[:, :, :, w + 2:w + 4] = jnp.zeros((nb, 3, tho + 2, 2), jnp.float32)

        # Current input tile; rows at/below the bottom of the image become
        # zero (handles the partial last block and clamped block indices).
        row_ids = r0 + lax.broadcasted_iota(jnp.int32, (1, 1, tho, 1), 2)
        x_cur = jnp.where(row_ids < img_h, x_ref[...], 0.0)
        z_ref[:, :, 2:tho + 2, 2:w + 2] = x_cur

        # Stencil as shifted ref-slices of the staging buffer:
        #   out[i, j] uses xg rows i, i-1, i-2 and columns j-2 .. j.
        x_self = z_ref[:, :, 2:tho + 2, 1:w + 3]   # xg[i,   j-1]
        x_up2 = z_ref[:, :, 0:tho,      1:w + 3]   # xg[i-2, j-1]
        x_up1r = z_ref[:, :, 1:tho + 1, 2:w + 4]   # xg[i-1, j]
        x_up1l = z_ref[:, :, 1:tho + 1, 0:w + 2]   # xg[i-1, j-2]

        v = x_self - x_up2
        g = x_up1r - x_up1l
        o_ref[...] = jnp.sqrt(v * v + g * g + _EPS)   # sqrt -> EUP slot

    return kernel


def get_gradient(x, *, row_tile=None, block_bytes_target=2 << 20):
    """x: (N, 3, H, W) float32 -> (N, 3, H+2, W+2) float32."""
    x = x.astype(jnp.float32)
    n, c, img_h, img_w = x.shape
    assert c == 3, "Get_gradient expects 3 input channels"
    ho, wo = img_h + 2, img_w + 2

    # ---- row tiling (multiple of 8 sublanes) ----
    rows_all = _round_up(ho, 8)
    if row_tile is None:
        tho = max(8, (block_bytes_target // (3 * img_w * 4)) // 8 * 8)
    else:
        tho = _round_up(max(8, row_tile), 8)
    tho = min(tho, rows_all)
    nh = _cdiv(ho, tho)            # output row tiles (grid axis 1)
    nbi = _cdiv(img_h, tho)        # input row blocks (may be < nh; clamped)

    # ---- batch packing: several images per grid step for small planes ----
    per_img_bytes = 3 * tho * max(img_w, wo) * 4
    nb = 1
    for cand in range(n, 0, -1):
        if n % cand == 0 and cand * per_img_bytes <= block_bytes_target:
            nb = cand
            break

    grid = (n // nb, nh)

    in_spec = pl.BlockSpec(
        (nb, 3, tho, img_w),
        lambda b, t, _m=nbi - 1: (b, 0, jnp.minimum(t, _m), 0))
    out_spec = pl.BlockSpec((nb, 3, tho, wo), lambda b, t: (b, 0, t, 0))

    # ---- honest VMEM budget: double-buffered blocks + staging + temporaries
    in_blk = nb * 3 * tho * img_w * 4
    out_blk = nb * 3 * tho * wo * 4
    z_blk = nb * 3 * (tho + 2) * (img_w + 4) * 4
    vmem_need = 2 * (in_blk + out_blk) + z_blk + 5 * max(in_blk, out_blk)
    vmem_limit = int(min(max(vmem_need + (2 << 20), 32 << 20), 128 << 20))

    elems_out = n * 3 * ho * wo
    cost = pl.CostEstimate(
        flops=6 * elems_out,             # 2 sub, 2 mul, 2 add per output elem
        transcendentals=elems_out,       # 1 sqrt per output elem
        bytes_accessed=n * 3 * img_h * img_w * 4 + elems_out * 4,
    )

    return pl.pallas_call(
        _make_kernel(nb, img_h, img_w, tho),
        out_shape=jax.ShapeDtypeStruct((n, 3, ho, wo), jnp.float32),
        grid_spec=pltpu.PrefetchScalarGridSpec(
            num_scalar_prefetch=0,
            grid=grid,
            in_specs=[in_spec],
            out_specs=out_spec,
            scratch_shapes=[
                pltpu.VMEM((nb, 3, tho + 2, img_w + 4), jnp.float32)],
        ),
        compiler_params=pltpu.CompilerParams(
            # batch axis is independent (megacore); the row-tile axis carries
            # the 2-row halo in scratch and must stay sequential.
            dimension_semantics=("parallel", "arbitrary"),
            vmem_limit_bytes=vmem_limit,
        ),
        cost_estimate=cost,
    )(x)


def _reference(x):
    """Pure-JAX reference (explicit conv with the fixed kernels)."""
    x = x.astype(jnp.float32)
    w_v = KERNEL_V.reshape(1, 1, 3, 3)
    w_h = KERNEL_H.reshape(1, 1, 3, 3)

    def conv1(inp, w):
        return lax.conv_general_dilated(
            inp, w, window_strides=(1, 1), padding=((2, 2), (2, 2)),
            dimension_numbers=("NCHW", "OIHW", "NCHW"))

    outs = []
    for ch in range(3):
        xc = x[:, ch:ch + 1]
        v = conv1(xc, w_v)
        h = conv1(xc, w_h)
        outs.append(jnp.sqrt(v * v + h * h + _EPS))
    return jnp.concatenate(outs, axis=1)


if __name__ == "__main__":
    key = jax.random.PRNGKey(0)

    # Primary case: the module's expected layout (N, 3, H, W).
    x = jax.random.normal(key, (2, 3, 16, 16), dtype=jnp.float32)
    out = jax.block_until_ready(get_gradient(x))
    ref = jax.block_until_ready(_reference(x))
    assert out.shape == (2, 3, 18, 18), out.shape
    assert jnp.allclose(out, ref, atol=1e-5, rtol=1e-5), float(
        jnp.max(jnp.abs(out - ref)))

    # Exercise the multi-row-tile path (halo carry + clamped/partial blocks).
    out_t = jax.block_until_ready(get_gradient(x, row_tile=8))
    assert jnp.allclose(out_t, ref, atol=1e-5, rtol=1e-5), float(
        jnp.max(jnp.abs(out_t - ref)))

    # Odd, non-square spatial size with a partial last row block.
    x2 = jax.random.normal(jax.random.PRNGKey(1), (1, 3, 40, 33), jnp.float32)
    out2 = jax.block_until_ready(get_gradient(x2, row_tile=16))
    ref2 = jax.block_until_ready(_reference(x2))
    assert out2.shape == (1, 3, 42, 35), out2.shape
    assert jnp.allclose(out2, ref2, atol=1e-5, rtol=1e-5), float(
        jnp.max(jnp.abs(out2 - ref2)))

    print("KERNEL_OK")
</pallas_src>

<mosaic_0001>
module attributes {stable_mosaic.version = 11 : i64} {
  func.func @kernel(%arg0: i32, %arg1: i32, %arg2: memref<2x3x24x16xf32, #tpu.memory_space<vmem>>, %arg3: memref<2x3x24x18xf32, #tpu.memory_space<vmem>>, %arg4: memref<2x3x26x20xf32, #tpu.memory_space<vmem>>) attributes {dimension_semantics = [#tpu.dimension_semantics<parallel>, #tpu.dimension_semantics<arbitrary>], iteration_bounds = array<i64: 1, 1>, scalar_prefetch = 0 : i64, scratch_operands = 1 : i64, tpu.core_type = #tpu.core_type<tc>, window_params = [{transform_indices = @transform_0, window_bounds = array<i64: 2, 3, 24, 16>}, {transform_indices = @transform_1, window_bounds = array<i64: 2, 3, 24, 18>}]} {
    %c24_i32 = arith.constant 24 : i32
    %0 = arith.muli %arg1, %c24_i32 : i32
    %c0_i32 = arith.constant 0 : i32
    %1 = arith.cmpi eq, %arg1, %c0_i32 : i32
    %2 = arith.extui %1 : i1 to i32
    %c0_i32_0 = arith.constant 0 : i32
    %3 = arith.cmpi ne, %2, %c0_i32_0 : i32
    scf.if %3 {
      %cst_38 = arith.constant 0.000000e+00 : f32
      %35 = vector.broadcast %cst_38 : f32 to vector<2x3x2x20xf32>
      %c0_39 = arith.constant 0 : index
      %c0_40 = arith.constant 0 : index
      %c0_41 = arith.constant 0 : index
      %c0_42 = arith.constant 0 : index
      %36 = vector.load %arg4[%c0_39, %c0_40, %c0_41, %c0_42] : memref<2x3x26x20xf32, #tpu.memory_space<vmem>>, vector<2x3x2x20xf32>
      tpu.vector_store %arg4[%c0_39, %c0_40, %c0_41, %c0_42], %35 {strides = array<i32>} : memref<2x3x26x20xf32, #tpu.memory_space<vmem>>, vector<2x3x2x20xf32>,
    } else {
    }
    %c0_i32_1 = arith.constant 0 : i32
    %4 = arith.cmpi sgt, %arg1, %c0_i32_1 : i32
    %5 = arith.extui %4 : i1 to i32
    %c0_i32_2 = arith.constant 0 : i32
    %6 = arith.cmpi ne, %5, %c0_i32_2 : i32
    scf.if %6 {
      %c0_38 = arith.constant 0 : index
      %c0_39 = arith.constant 0 : index
      %c24 = arith.constant 24 : index
      %c0_40 = arith.constant 0 : index
      %35 = vector.load %arg4[%c0_38, %c0_39, %c24, %c0_40] : memref<2x3x26x20xf32, #tpu.memory_space<vmem>>, vector<2x3x2x20xf32>
      %c0_41 = arith.constant 0 : index
      %c0_42 = arith.constant 0 : index
      %c0_43 = arith.constant 0 : index
      %c0_44 = arith.constant 0 : index
      %36 = vector.load %arg4[%c0_41, %c0_42, %c0_43, %c0_44] : memref<2x3x26x20xf32, #tpu.memory_space<vmem>>, vector<2x3x2x20xf32>
      tpu.vector_store %arg4[%c0_41, %c0_42, %c0_43, %c0_44], %35 {strides = array<i32>} : memref<2x3x26x20xf32, #tpu.memory_space<vmem>>, vector<2x3x2x20xf32>,
    } else {
    }
    %cst = arith.constant 0.000000e+00 : f32
    %7 = vector.broadcast %cst : f32 to vector<2x3x26x2xf32>
    %c0 = arith.constant 0 : index
    %c0_3 = arith.constant 0 : index
    %c0_4 = arith.constant 0 : index
    %c0_5 = arith.constant 0 : index
    %8 = vector.load %arg4[%c0, %c0_3, %c0_4, %c0_5] : memref<2x3x26x20xf32, #tpu.memory_space<vmem>>, vector<2x3x26x2xf32>
    tpu.vector_store %arg4[%c0, %c0_3, %c0_4, %c0_5], %7 {strides = array<i32>} : memref<2x3x26x20xf32, #tpu.memory_space<vmem>>, vector<2x3x26x2xf32>,
    %cst_6 = arith.constant 0.000000e+00 : f32
    %9 = vector.broadcast %cst_6 : f32 to vector<2x3x26x2xf32>
    %c0_7 = arith.constant 0 : index
    %c0_8 = arith.constant 0 : index
    %c0_9 = arith.constant 0 : index
    %c18 = arith.constant 18 : index
    %10 = vector.load %arg4[%c0_7, %c0_8, %c0_9, %c18] : memref<2x3x26x20xf32, #tpu.memory_space<vmem>>, vector<2x3x26x2xf32>
    tpu.vector_store %arg4[%c0_7, %c0_8, %c0_9, %c18], %9 {strides = array<i32>} : memref<2x3x26x20xf32, #tpu.memory_space<vmem>>, vector<2x3x26x2xf32>,
    %11 = tpu.iota {dimensions = array<i32: 2>} : vector<1x1x24x1xi32>
    %12 = vector.broadcast %0 : i32 to vector<1x1x24x1xi32>
    %13 = arith.addi %12, %11 : vector<1x1x24x1xi32>
    %c16_i32 = arith.constant 16 : i32
    %14 = vector.broadcast %c16_i32 : i32 to vector<1x1x24x1xi32>
    %15 = arith.cmpi slt, %13, %14 : vector<1x1x24x1xi32>
    %c0_10 = arith.constant 0 : index
    %c0_11 = arith.constant 0 : index
    %c0_12 = arith.constant 0 : index
    %c0_13 = arith.constant 0 : index
    %16 = vector.load %arg2[%c0_10, %c0_11, %c0_12, %c0_13] : memref<2x3x24x16xf32, #tpu.memory_space<vmem>>, vector<2x3x24x16xf32>
    %cst_14 = arith.constant 0.000000e+00 : f32
    %17 = vector.shape_cast %15 : vector<1x1x24x1xi1> to vector<1x1x24x1xi1>
    %18 = vector.broadcast %17 : vector<1x1x24x1xi1> to vector<2x3x24x16xi1>
    %19 = vector.broadcast %cst_14 : f32 to vector<2x3x24x16xf32>
    %20 = arith.select %18, %16, %19 : vector<2x3x24x16xi1>, vector<2x3x24x16xf32>
    %c0_15 = arith.constant 0 : index
    %c0_16 = arith.constant 0 : index
    %c2 = arith.constant 2 : index
    %c2_17 = arith.constant 2 : index
    %21 = vector.load %arg4[%c0_15, %c0_16, %c2, %c2_17] : memref<2x3x26x20xf32, #tpu.memory_space<vmem>>, vector<2x3x24x16xf32>
    tpu.vector_store %arg4[%c0_15, %c0_16, %c2, %c2_17], %20 {strides = array<i32>} : memref<2x3x26x20xf32, #tpu.memory_space<vmem>>, vector<2x3x24x16xf32>,
    %c0_18 = arith.constant 0 : index
    %c0_19 = arith.constant 0 : index
    %c2_20 = arith.constant 2 : index
    %c1 = arith.constant 1 : index
    %22 = vector.load %arg4[%c0_18, %c0_19, %c2_20, %c1] : memref<2x3x26x20xf32, #tpu.memory_space<vmem>>, vector<2x3x24x18xf32>
    %c0_21 = arith.constant 0 : index
    %c0_22 = arith.constant 0 : index
    %c0_23 = arith.constant 0 : index
    %c1_24 = arith.constant 1 : index
    %23 = vector.load %arg4[%c0_21, %c0_22, %c0_23, %c1_24] : memref<2x3x26x20xf32, #tpu.memory_space<vmem>>, vector<2x3x24x18xf32>
    %c0_25 = arith.constant 0 : index
    %c0_26 = arith.constant 0 : index
    %c1_27 = arith.constant 1 : index
    %c2_28 = arith.constant 2 : index
    %24 = vector.load %arg4[%c0_25, %c0_26, %c1_27, %c2_28] : memref<2x3x26x20xf32, #tpu.memory_space<vmem>>, vector<2x3x24x18xf32>
    %c0_29 = arith.constant 0 : index
    %c0_30 = arith.constant 0 : index
    %c1_31 = arith.constant 1 : index
    %c0_32 = arith.constant 0 : index
    %25 = vector.load %arg4[%c0_29, %c0_30, %c1_31, %c0_32] : memref<2x3x26x20xf32, #tpu.memory_space<vmem>>, vector<2x3x24x18xf32>
    %26 = arith.subf %22, %23 : vector<2x3x24x18xf32>
    %27 = arith.subf %24, %25 : vector<2x3x24x18xf32>
    %28 = arith.mulf %26, %26 : vector<2x3x24x18xf32>
    %29 = arith.mulf %27, %27 : vector<2x3x24x18xf32>
    %30 = arith.addf %28, %29 : vector<2x3x24x18xf32>
    %cst_33 = arith.constant 9.99999997E-7 : f32
    %31 = vector.broadcast %cst_33 : f32 to vector<2x3x24x18xf32>
    %32 = arith.addf %30, %31 : vector<2x3x24x18xf32>
    %33 = math.sqrt %32 : vector<2x3x24x18xf32>
    %c0_34 = arith.constant 0 : index
    %c0_35 = arith.constant 0 : index
    %c0_36 = arith.constant 0 : index
    %c0_37 = arith.constant 0 : index
    %34 = vector.load %arg3[%c0_34, %c0_35, %c0_36, %c0_37] : memref<2x3x24x18xf32, #tpu.memory_space<vmem>>, vector<2x3x24x18xf32>
    tpu.vector_store %arg3[%c0_34, %c0_35, %c0_36, %c0_37], %33 {strides = array<i32>} : memref<2x3x24x18xf32, #tpu.memory_space<vmem>>, vector<2x3x24x18xf32>,
    return
  }
  func.func @transform_0(%arg0: i32, %arg1: i32) -> (i32, i32, i32, i32) {
    %c0_i32 = arith.constant 0 : i32
    %0 = arith.minsi %arg1, %c0_i32 : i32
    %c0_i32_0 = arith.constant 0 : i32
    %c0_i32_1 = arith.constant 0 : i32
    %c0_i32_2 = arith.constant 0 : i32
    return %arg0, %c0_i32_0, %0, %c0_i32_1 : i32, i32, i32, i32
  }
  func.func @transform_1(%arg0: i32, %arg1: i32) -> (i32, i32, i32, i32) {
    %c0_i32 = arith.constant 0 : i32
    %c0_i32_0 = arith.constant 0 : i32
    %c0_i32_1 = arith.constant 0 : i32
    return %arg0, %c0_i32, %arg1, %c0_i32_0 : i32, i32, i32, i32
  }
}

</mosaic_0001>

<llo_original>
// kernel: tpu_custom_call.1
$region0: #{tpu_custom_call.1}
  #allocation0 [shape = 'u32[]', space=smem, size = 0x4, offset = 0x4, fixed_abs, tag = 'smem constant byte address 0x4 - core index']
  #allocation1 [shape = 'u32[144,128]{1,0:T(1,128)}', space=vmem, size = 0x12000, scoped, tag = 'internal scratch']
  #allocation2 [shape = 'f32[2,3,26,20]{3,2,1,0:T(8,128)}', space=vmem, size = 0x18000, scoped, tag = 'scratch operand']
  #allocation5 [shape = 's32[]', space=sflag, size = 0x4, offset = 0, fixed_abs, tag = 'sflag constant byte address 0x0 - dummy sync flag']
  %s0 = inlined_call_operand.hbm [shape: f32[2,3,16,16], index: 0, kind: input, shape index: {}]
  %s1 = inlined_call_operand.vmem [shape: f32[2,3,18,18], index: 1, kind: output, shape index: {}]
  %s2 = sld [smem:[#allocation0]]
  $region26: #{tpu_custom_call.1} parent=0
    _
  %s4 = ssub.s32 1, %s2
  %s5 = scalar_select 0, %s4, %s2
  $region1: #{tpu_custom_call.1} parent=0
    #allocation3 [shape = 'u8[73728]{0}', space=vmem, size = 0x12000, scoped, tag = 'input window, operand 0, single buffered']
    #allocation4 [shape = 's32[1]{0}', space=sflag, size = 0x4, scoped, tag = 'scoped memory for tpu_custom_call.1']
    %6 = vsyncpa [#allocation4], 0
    // Predicated region
    $region2: #{tpu_custom_call.1} parent=1 // pred_check
      _
    $region3: #{tpu_custom_call.1} parent=1 // pred_check_branch
      %8 = sbr.rel (0) target = $region5
    $region4: #{tpu_custom_call.1} parent=1 // pred_region
      #allocation6 [shape = 'u32[6]{0}', space=smem, size = 0x18, scoped, tag = 'DMA stride descriptor']
      %s10 = ssub.s32 2304, 1536
      %11 = vsyncadd [#allocation4], %s10
      %s13 = sshll.u32 1, 14
      %s14 = sxor.u32 4294967295, %s13
      %s16 = sld [smem:[#allocation0]]
      %s17 = sadd.s32 2, %s16
      %s19 = sshll.u32 7, 26
      %s20 = sxor.u32 4294967295, %s19
      %s21 = sand.u32 0, %s20
      %s22 = sshll.u32 %s17, 26
      %s23 = sor.u32 %s21, %s22
      %s24 = sshll.u32 [#allocation3], 4
      %s25 = int_to_ptr.vmem [resolvable:$true] %s24
      %31 = sst [smem:[#allocation6]] 256
      %s32 = scalar_lea.smem [#allocation6], 1
      %33 = sst [smem:[%s32]] 384
      %s34 = scalar_lea.smem [#allocation6], 2
      %35 = sst [smem:[%s34]] 2
      %s36 = scalar_lea.smem [#allocation6], 3
      %37 = sst [smem:[%s36]] 128
      %s38 = scalar_lea.smem [#allocation6], 4
      %39 = sst [smem:[%s38]] 128
      %s40 = scalar_lea.smem [#allocation6], 5
      %41 = sst [smem:[%s40]] 8
      %43 = dma.general %s0, 1536, %s25, [#allocation4], [#allocation5], [#allocation6], %s23, 0
    $region5: #{tpu_custom_call.1} parent=1 // pred_fallthru
      _
    // Predicated region
    $region6: #{tpu_custom_call.1} parent=1 // pred_check
      _
    $region7: #{tpu_custom_call.1} parent=1 // pred_check_branch
      %45 = sbr.rel (0) target = $region9
    $region8: #{tpu_custom_call.1} parent=1 // pred_region
      %46 = dma.done [#allocation4], 2304
    $region9: #{tpu_custom_call.1} parent=1 // pred_fallthru
      _
    %s47 = smul.u32 0, 24
    %p48 = scmp.eq.s32.totalorder 0, 0
    // Predicated region
    $region10: #{tpu_custom_call.1} parent=1 // pred_check
      %p49 = pneg %p48
    $region11: #{tpu_custom_call.1} parent=1 // pred_check_branch
      %51 = sbr.rel (%p49) target = $region13
    $region12: #{tpu_custom_call.1} parent=1 // pred_region
      %vm52 = vcmask 156672
      %53 = vst.msk [vmem:[#allocation2] sm:$0x3] %vm52, 0.0
      %54 = vst.msk [vmem:[#allocation2 + $0x20] sm:$0x3] %vm52, 0.0
      %55 = vst.msk [vmem:[#allocation2 + $0x40] sm:$0x3] %vm52, 0.0
      %56 = vst.msk [vmem:[#allocation2 + $0x60] sm:$0x3] %vm52, 0.0
      %57 = vst.msk [vmem:[#allocation2 + $0x80] sm:$0x3] %vm52, 0.0
      %58 = vst.msk [vmem:[#allocation2 + $0xa0] sm:$0x3] %vm52, 0.0
    $region13: #{tpu_custom_call.1} parent=1 // pred_fallthru
      _
    %p59 = scmp.gt.s32.totalorder 0, 0
    // Predicated region
    $region14: #{tpu_custom_call.1} parent=1 // pred_check
      %p60 = pneg %p59
    $region15: #{tpu_custom_call.1} parent=1 // pred_check_branch
      %62 = sbr.rel (%p60) target = $region17
    $region16: #{tpu_custom_call.1} parent=1 // pred_region
      %v63 = vld [vmem:[#allocation2 + $0x18] sm:$0x3]
      %v64 = vld [vmem:[#allocation2 + $0x38] sm:$0x3]
      %v65 = vld [vmem:[#allocation2 + $0x58] sm:$0x3]
      %v66 = vld [vmem:[#allocation2 + $0x78] sm:$0x3]
      %v67 = vld [vmem:[#allocation2 + $0x98] sm:$0x3]
      %v68 = vld [vmem:[#allocation2 + $0xb8] sm:$0x3]
      %vm69 = vcmask 156672
      %70 = vst.msk [vmem:[#allocation2] sm:$0x3] %vm69, %v63
      %71 = vst.msk [vmem:[#allocation2 + $0x20] sm:$0x3] %vm69, %v64
      %72 = vst.msk [vmem:[#allocation2 + $0x40] sm:$0x3] %vm69, %v65
      %73 = vst.msk [vmem:[#allocation2 + $0x60] sm:$0x3] %vm69, %v66
      %74 = vst.msk [vmem:[#allocation2 + $0x80] sm:$0x3] %vm69, %v67
      %75 = vst.msk [vmem:[#allocation2 + $0xa0] sm:$0x3] %vm69, %v68
    $region17: #{tpu_custom_call.1} parent=1 // pred_fallthru
      _
    %vm76 = vcmask 15360
    %77 = vst.msk [vmem:[#allocation2] sm:$0xff] %vm76, 0.0
    %78 = vst.msk [vmem:[#allocation2 + $0x8] sm:$0xff] %vm76, 0.0
    %79 = vst.msk [vmem:[#allocation2 + $0x10] sm:$0xff] %vm76, 0.0
    %vm80 = vcmask 9216
    %81 = vst.msk [vmem:[#allocation2 + $0x18] sm:$0x3] %vm80, 0.0
    %82 = vst.msk [vmem:[#allocation2 + $0x20] sm:$0xff] %vm76, 0.0
    %83 = vst.msk [vmem:[#allocation2 + $0x28] sm:$0xff] %vm76, 0.0
    %84 = vst.msk [vmem:[#allocation2 + $0x30] sm:$0xff] %vm76, 0.0
    %85 = vst.msk [vmem:[#allocation2 + $0x38] sm:$0x3] %vm80, 0.0
    %86 = vst.msk [vmem:[#allocation2 + $0x40] sm:$0xff] %vm76, 0.0
    %87 = vst.msk [vmem:[#allocation2 + $0x48] sm:$0xff] %vm76, 0.0
    %88 = vst.msk [vmem:[#allocation2 + $0x50] sm:$0xff] %vm76, 0.0
    %89 = vst.msk [vmem:[#allocation2 + $0x58] sm:$0x3] %vm80, 0.0
    %90 = vst.msk [vmem:[#allocation2 + $0x60] sm:$0xff] %vm76, 0.0
    %91 = vst.msk [vmem:[#allocation2 + $0x68] sm:$0xff] %vm76, 0.0
    %92 = vst.msk [vmem:[#allocation2 + $0x70] sm:$0xff] %vm76, 0.0
    %93 = vst.msk [vmem:[#allocation2 + $0x78] sm:$0x3] %vm80, 0.0
    %94 = vst.msk [vmem:[#allocation2 + $0x80] sm:$0xff] %vm76, 0.0
    %95 = vst.msk [vmem:[#allocation2 + $0x88] sm:$0xff] %vm76, 0.0
    %96 = vst.msk [vmem:[#allocation2 + $0x90] sm:$0xff] %vm76, 0.0
    %97 = vst.msk [vmem:[#allocation2 + $0x98] sm:$0x3] %vm80, 0.0
    %98 = vst.msk [vmem:[#allocation2 + $0xa0] sm:$0xff] %vm76, 0.0
    %99 = vst.msk [vmem:[#allocation2 + $0xa8] sm:$0xff] %vm76, 0.0
    %100 = vst.msk [vmem:[#allocation2 + $0xb0] sm:$0xff] %vm76, 0.0
    %101 = vst.msk [vmem:[#allocation2 + $0xb8] sm:$0x3] %vm80, 0.0
    %vm102 = vcmask 162960
    %103 = vst.msk [vmem:[#allocation2] sm:$0xff] %vm102, 0.0
    %104 = vst.msk [vmem:[#allocation2 + $0x8] sm:$0xff] %vm102, 0.0
    %105 = vst.msk [vmem:[#allocation2 + $0x10] sm:$0xff] %vm102, 0.0
    %vm106 = vcmask 156816
    %107 = vst.msk [vmem:[#allocation2 + $0x18] sm:$0x3] %vm106, 0.0
    %108 = vst.msk [vmem:[#allocation2 + $0x20] sm:$0xff] %vm102, 0.0
    %109 = vst.msk [vmem:[#allocation2 + $0x28] sm:$0xff] %vm102, 0.0
    %110 = vst.msk [vmem:[#allocation2 + $0x30] sm:$0xff] %vm102, 0.0
    %111 = vst.msk [vmem:[#allocation2 + $0x38] sm:$0x3] %vm106, 0.0
    %112 = vst.msk [vmem:[#allocation2 + $0x40] sm:$0xff] %vm102, 0.0
    %113 = vst.msk [vmem:[#allocation2 + $0x48] sm:$0xff] %vm102, 0.0
    %114 = vst.msk [vmem:[#allocation2 + $0x50] sm:$0xff] %vm102, 0.0
    %115 = vst.msk [vmem:[#allocation2 + $0x58] sm:$0x3] %vm106, 0.0
    %116 = vst.msk [vmem:[#allocation2 + $0x60] sm:$0xff] %vm102, 0.0
    %117 = vst.msk [vmem:[#allocation2 + $0x68] sm:$0xff] %vm102, 0.0
    %118 = vst.msk [vmem:[#allocation2 + $0x70] sm:$0xff] %vm102, 0.0
    %119 = vst.msk [vmem:[#allocation2 + $0x78] sm:$0x3] %vm106, 0.0
    %120 = vst.msk [vmem:[#allocation2 + $0x80] sm:$0xff] %vm102, 0.0
    %121 = vst.msk [vmem:[#allocation2 + $0x88] sm:$0xff] %vm102, 0.0
    %122 = vst.msk [vmem:[#allocation2 + $0x90] sm:$0xff] %vm102, 0.0
    %123 = vst.msk [vmem:[#allocation2 + $0x98] sm:$0x3] %vm106, 0.0
    %124 = vst.msk [vmem:[#allocation2 + $0xa0] sm:$0xff] %vm102, 0.0
    %125 = vst.msk [vmem:[#allocation2 + $0xa8] sm:$0xff] %vm102, 0.0
    %126 = vst.msk [vmem:[#allocation2 + $0xb0] sm:$0xff] %vm102, 0.0
    %127 = vst.msk [vmem:[#allocation2 + $0xb8] sm:$0x3] %vm106, 0.0
    %v128 = vlaneseq
    %v129 = vshrl.u32 %v128, 7
    %v130 = vadd.s32 %v129, 8
    %v131 = vadd.s32 %v129, 16
    %v132 = vstv %s47
    %v133 = vadd.s32 %v132, %v129
    %v134 = vadd.s32 %v132, %v130
    %v135 = vadd.s32 %v132, %v131
    %vm136 = vcmp.lt.s32.totalorder %v133, 16
    %vm137 = vcmp.lt.s32.totalorder %v134, 16
    %vm138 = vcmp.lt.s32.totalorder %v135, 16
    %v139 = vld [vmem:[#allocation3] sm:$0xff]
    %v140 = vld [vmem:[#allocation3 + $0x8] sm:$0xff]
    %v141 = vld [vmem:[#allocation3 + $0x10] sm:$0xff]
    %v142 = vld [vmem:[#allocation3 + $0x18] sm:$0xff]
    %v143 = vld [vmem:[#allocation3 + $0x20] sm:$0xff]
    %v144 = vld [vmem:[#allocation3 + $0x28] sm:$0xff]
    %v145 = vld [vmem:[#allocation3 + $0x30] sm:$0xff]
    %v146 = vld [vmem:[#allocation3 + $0x38] sm:$0xff]
    %v147 = vld [vmem:[#allocation3 + $0x40] sm:$0xff]
    %v148 = vld [vmem:[#allocation3 + $0x48] sm:$0xff]
    %v149 = vld [vmem:[#allocation3 + $0x50] sm:$0xff]
    %v150 = vld [vmem:[#allocation3 + $0x58] sm:$0xff]
    %v151 = vld [vmem:[#allocation3 + $0x60] sm:$0xff]
    %v152 = vld [vmem:[#allocation3 + $0x68] sm:$0xff]
    %v153 = vld [vmem:[#allocation3 + $0x70] sm:$0xff]
    %v154 = vld [vmem:[#allocation3 + $0x78] sm:$0xff]
    %v155 = vld [vmem:[#allocation3 + $0x80] sm:$0xff]
    %v156 = vld [vmem:[#allocation3 + $0x88] sm:$0xff]
    %v157 = vsel %vm136, 1, 0
    %v158 = vsel %vm137, 1, 0
    %v159 = vsel %vm138, 1, 0
    %vm160 = vcmp.eq.s32.totalorder %v157, 1
    %vm161 = vcmp.eq.s32.totalorder %v158, 1
    %vm162 = vcmp.eq.s32.totalorder %v159, 1
    %v163 = vsel %vm160, %v139, 0.0
    %v164 = vsel %vm161, %v140, 0.0
    %v165 = vsel %vm162, %v141, 0.0
    %v166 = vsel %vm160, %v142, 0.0
    %v167 = vsel %vm161, %v143, 0.0
    %v168 = vsel %vm162, %v144, 0.0
    %v169 = vsel %vm160, %v145, 0.0
    %v170 = vsel %vm161, %v146, 0.0
    %v171 = vsel %vm162, %v147, 0.0
    %v172 = vsel %vm160, %v148, 0.0
    %v173 = vsel %vm161, %v149, 0.0
    %v174 = vsel %vm162, %v150, 0.0
    %v175 = vsel %vm160, %v151, 0.0
    %v176 = vsel %vm161, %v152, 0.0
    %v177 = vsel %vm162, %v153, 0.0
    %v178 = vsel %vm160, %v154, 0.0
    %v179 = vsel %vm161, %v155, 0.0
    %v180 = vsel %vm162, %v156, 0.0
    %199 = vrot.lane.b32.xlu0 %v163, 2
    %v200 = vpop.permute.xlu0 %199
    %201 = vrot.lane.b32.xlu0 %v164, 2
    %v202 = vpop.permute.xlu0 %201
    %203 = vrot.lane.b32.xlu0 %v165, 2
    %v204 = vpop.permute.xlu0 %203
    %205 = vrot.lane.b32.xlu0 %v166, 2
    %v206 = vpop.permute.xlu0 %205
    %207 = vrot.lane.b32.xlu0 %v167, 2
    %v208 = vpop.permute.xlu0 %207
    %209 = vrot.lane.b32.xlu0 %v168, 2
    %v210 = vpop.permute.xlu0 %209
    %211 = vrot.lane.b32.xlu0 %v169, 2
    %v212 = vpop.permute.xlu0 %211
    %213 = vrot.lane.b32.xlu0 %v170, 2
    %v214 = vpop.permute.xlu0 %213
    %215 = vrot.lane.b32.xlu0 %v171, 2
    %v216 = vpop.permute.xlu0 %215
    %217 = vrot.lane.b32.xlu0 %v172, 2
    %v218 = vpop.permute.xlu0 %217
    %219 = vrot.lane.b32.xlu0 %v173, 2
    %v220 = vpop.permute.xlu0 %219
    %221 = vrot.lane.b32.xlu0 %v174, 2
    %v222 = vpop.permute.xlu0 %221
    %223 = vrot.lane.b32.xlu0 %v175, 2
    %v224 = vpop.permute.xlu0 %223
    %225 = vrot.lane.b32.xlu0 %v176, 2
    %v226 = vpop.permute.xlu0 %225
    %227 = vrot.lane.b32.xlu0 %v177, 2
    %v228 = vpop.permute.xlu0 %227
    %229 = vrot.lane.b32.xlu0 %v178, 2
    %v230 = vpop.permute.xlu0 %229
    %231 = vrot.lane.b32.xlu0 %v179, 2
    %v232 = vpop.permute.xlu0 %231
    %233 = vrot.lane.b32.xlu0 %v180, 2
    %v234 = vpop.permute.xlu0 %233
    %vm253 = vcmask 146448
    %254 = vst.msk [vmem:[#allocation2 + $0x2] sm:$0xff] %vm253, %v200
    %255 = vst.msk [vmem:[#allocation2 + $0xa] sm:$0xff] %vm253, %v202
    %256 = vst.msk [vmem:[#allocation2 + $0x12] sm:$0xff] %vm253, %v204
    %257 = vst.msk [vmem:[#allocation2 + $0x22] sm:$0xff] %vm253, %v206
    %258 = vst.msk [vmem:[#allocation2 + $0x2a] sm:$0xff] %vm253, %v208
    %259 = vst.msk [vmem:[#allocation2 + $0x32] sm:$0xff] %vm253, %v210
    %260 = vst.msk [vmem:[#allocation2 + $0x42] sm:$0xff] %vm253, %v212
    %261 = vst.msk [vmem:[#allocation2 + $0x4a] sm:$0xff] %vm253, %v214
    %262 = vst.msk [vmem:[#allocation2 + $0x52] sm:$0xff] %vm253, %v216
    %263 = vst.msk [vmem:[#allocation2 + $0x62] sm:$0xff] %vm253, %v218
    %264 = vst.msk [vmem:[#allocation2 + $0x6a] sm:$0xff] %vm253, %v220
    %265 = vst.msk [vmem:[#allocation2 + $0x72] sm:$0xff] %vm253, %v222
    %266 = vst.msk [vmem:[#allocation2 + $0x82] sm:$0xff] %vm253, %v224
    %267 = vst.msk [vmem:[#allocation2 + $0x8a] sm:$0xff] %vm253, %v226
    %268 = vst.msk [vmem:[#allocation2 + $0x92] sm:$0xff] %vm253, %v228
    %269 = vst.msk [vmem:[#allocation2 + $0xa2] sm:$0xff] %vm253, %v230
    %270 = vst.msk [vmem:[#allocation2 + $0xaa] sm:$0xff] %vm253, %v232
    %271 = vst.msk [vmem:[#allocation2 + $0xb2] sm:$0xff] %vm253, %v234
    %v272 = vld [vmem:[#allocation2 + $0x2] sm:$0xff]
    %v273 = vld [vmem:[#allocation2 + $0xa] sm:$0xff]
    %v274 = vld [vmem:[#allocation2 + $0x12] sm:$0xff]
    %v275 = vld [vmem:[#allocation2 + $0x22] sm:$0xff]
    %v276 = vld [vmem:[#allocation2 + $0x2a] sm:$0xff]
    %v277 = vld [vmem:[#allocation2 + $0x32] sm:$0xff]
    %v278 = vld [vmem:[#allocation2 + $0x42] sm:$0xff]
    %v279 = vld [vmem:[#allocation2 + $0x4a] sm:$0xff]
    %v280 = vld [vmem:[#allocation2 + $0x52] sm:$0xff]
    %v281 = vld [vmem:[#allocation2 + $0x62] sm:$0xff]
    %v282 = vld [vmem:[#allocation2 + $0x6a] sm:$0xff]
    %v283 = vld [vmem:[#allocation2 + $0x72] sm:$0xff]
    %v284 = vld [vmem:[#allocation2 + $0x82] sm:$0xff]
    %v285 = vld [vmem:[#allocation2 + $0x8a] sm:$0xff]
    %v286 = vld [vmem:[#allocation2 + $0x92] sm:$0xff]
    %v287 = vld [vmem:[#allocation2 + $0xa2] sm:$0xff]
    %v288 = vld [vmem:[#allocation2 + $0xaa] sm:$0xff]
    %v289 = vld [vmem:[#allocation2 + $0xb2] sm:$0xff]
    %v290 = vld [vmem:[#allocation2] sm:$0xff]
    %v291 = vld [vmem:[#allocation2 + $0x8] sm:$0xff]
    %v292 = vld [vmem:[#allocation2 + $0x10] sm:$0xff]
    %v293 = vld [vmem:[#allocation2 + $0x20] sm:$0xff]
    %v294 = vld [vmem:[#allocation2 + $0x28] sm:$0xff]
    %v295 = vld [vmem:[#allocation2 + $0x30] sm:$0xff]
    %v296 = vld [vmem:[#allocation2 + $0x40] sm:$0xff]
    %v297 = vld [vmem:[#allocation2 + $0x48] sm:$0xff]
    %v298 = vld [vmem:[#allocation2 + $0x50] sm:$0xff]
    %v299 = vld [vmem:[#allocation2 + $0x60] sm:$0xff]
    %v300 = vld [vmem:[#allocation2 + $0x68] sm:$0xff]
    %v301 = vld [vmem:[#allocation2 + $0x70] sm:$0xff]
    %v302 = vld [vmem:[#allocation2 + $0x80] sm:$0xff]
    %v303 = vld [vmem:[#allocation2 + $0x88] sm:$0xff]
    %v304 = vld [vmem:[#allocation2 + $0x90] sm:$0xff]
    %v305 = vld [vmem:[#allocation2 + $0xa0] sm:$0xff]
    %v306 = vld [vmem:[#allocation2 + $0xa8] sm:$0xff]
    %v307 = vld [vmem:[#allocation2 + $0xb0] sm:$0xff]
    %v308 = vld [vmem:[#allocation2 + $0x1] sm:$0xff]
    %v309 = vld [vmem:[#allocation2 + $0x9] sm:$0xff]
    %v310 = vld [vmem:[#allocation2 + $0x11] sm:$0xff]
    %v311 = vld [vmem:[#allocation2 + $0x21] sm:$0xff]
    %v312 = vld [vmem:[#allocation2 + $0x29] sm:$0xff]
    %v313 = vld [vmem:[#allocation2 + $0x31] sm:$0xff]
    %v314 = vld [vmem:[#allocation2 + $0x41] sm:$0xff]
    %v315 = vld [vmem:[#allocation2 + $0x49] sm:$0xff]
    %v316 = vld [vmem:[#allocation2 + $0x51] sm:$0xff]
    %v317 = vld [vmem:[#allocation2 + $0x61] sm:$0xff]
    %v318 = vld [vmem:[#allocation2 + $0x69] sm:$0xff]
    %v319 = vld [vmem:[#allocation2 + $0x71] sm:$0xff]
    %v320 = vld [vmem:[#allocation2 + $0x81] sm:$0xff]
    %v321 = vld [vmem:[#allocation2 + $0x89] sm:$0xff]
    %v322 = vld [vmem:[#allocation2 + $0x91] sm:$0xff]
    %v323 = vld [vmem:[#allocation2 + $0xa1] sm:$0xff]
    %v324 = vld [vmem:[#allocation2 + $0xa9] sm:$0xff]
    %v325 = vld [vmem:[#allocation2 + $0xb1] sm:$0xff]
    %v326 = vsub.f32 %v272, %v290
    %v327 = vsub.f32 %v273, %v291
    %v328 = vsub.f32 %v274, %v292
    %v329 = vsub.f32 %v275, %v293
    %v330 = vsub.f32 %v276, %v294
    %v331 = vsub.f32 %v277, %v295
    %v332 = vsub.f32 %v278, %v296
    %v333 = vsub.f32 %v279, %v297
    %v334 = vsub.f32 %v280, %v298
    %v335 = vsub.f32 %v281, %v299
    %v336 = vsub.f32 %v282, %v300
    %v337 = vsub.f32 %v283, %v301
    %v338 = vsub.f32 %v284, %v302
    %v339 = vsub.f32 %v285, %v303
    %v340 = vsub.f32 %v286, %v304
    %v341 = vsub.f32 %v287, %v305
    %v342 = vsub.f32 %v288, %v306
    %v343 = vsub.f32 %v289, %v307
    %362 = vrot.lane.b32.xlu0 %v308, 2
    %v363 = vpop.permute.xlu0 %362
    %364 = vrot.lane.b32.xlu0 %v309, 2
    %v365 = vpop.permute.xlu0 %364
    %366 = vrot.lane.b32.xlu0 %v310, 2
    %v367 = vpop.permute.xlu0 %366
    %368 = vrot.lane.b32.xlu0 %v311, 2
    %v369 = vpop.permute.xlu0 %368
    %370 = vrot.lane.b32.xlu0 %v312, 2
    %v371 = vpop.permute.xlu0 %370
    %372 = vrot.lane.b32.xlu0 %v313, 2
    %v373 = vpop.permute.xlu0 %372
    %374 = vrot.lane.b32.xlu0 %v314, 2
    %v375 = vpop.permute.xlu0 %374
    %376 = vrot.lane.b32.xlu0 %v315, 2
    %v377 = vpop.permute.xlu0 %376
    %378 = vrot.lane.b32.xlu0 %v316, 2
    %v379 = vpop.permute.xlu0 %378
    %380 = vrot.lane.b32.xlu0 %v317, 2
    %v381 = vpop.permute.xlu0 %380
    %382 = vrot.lane.b32.xlu0 %v318, 2
    %v383 = vpop.permute.xlu0 %382
    %384 = vrot.lane.b32.xlu0 %v319, 2
    %v385 = vpop.permute.xlu0 %384
    %386 = vrot.lane.b32.xlu0 %v320, 2
    %v387 = vpop.permute.xlu0 %386
    %388 = vrot.lane.b32.xlu0 %v321, 2
    %v389 = vpop.permute.xlu0 %388
    %390 = vrot.lane.b32.xlu0 %v322, 2
    %v391 = vpop.permute.xlu0 %390
    %392 = vrot.lane.b32.xlu0 %v323, 2
    %v393 = vpop.permute.xlu0 %392
    %394 = vrot.lane.b32.xlu0 %v324, 2
    %v395 = vpop.permute.xlu0 %394
    %396 = vrot.lane.b32.xlu0 %v325, 2
    %v397 = vpop.permute.xlu0 %396
    %v416 = vsub.f32 %v308, %v363
    %v417 = vsub.f32 %v309, %v365
    %v418 = vsub.f32 %v310, %v367
    %v419 = vsub.f32 %v311, %v369
    %v420 = vsub.f32 %v312, %v371
    %v421 = vsub.f32 %v313, %v373
    %v422 = vsub.f32 %v314, %v375
    %v423 = vsub.f32 %v315, %v377
    %v424 = vsub.f32 %v316, %v379
    %v425 = vsub.f32 %v317, %v381
    %v426 = vsub.f32 %v318, %v383
    %v427 = vsub.f32 %v319, %v385
    %v428 = vsub.f32 %v320, %v387
    %v429 = vsub.f32 %v321, %v389
    %v430 = vsub.f32 %v322, %v391
    %v431 = vsub.f32 %v323, %v393
    %v432 = vsub.f32 %v324, %v395
    %v433 = vsub.f32 %v325, %v397
    %v434 = vmul.f32 %v326, %v326
    %v435 = vmul.f32 %v327, %v327
    %v436 = vmul.f32 %v328, %v328
    %v437 = vmul.f32 %v329, %v329
    %v438 = vmul.f32 %v330, %v330
    %v439 = vmul.f32 %v331, %v331
    %v440 = vmul.f32 %v332, %v332
    %v441 = vmul.f32 %v333, %v333
    %v442 = vmul.f32 %v334, %v334
    %v443 = vmul.f32 %v335, %v335
    %v444 = vmul.f32 %v336, %v336
    %v445 = vmul.f32 %v337, %v337
    %v446 = vmul.f32 %v338, %v338
    %v447 = vmul.f32 %v339, %v339
    %v448 = vmul.f32 %v340, %v340
    %v449 = vmul.f32 %v341, %v341
    %v450 = vmul.f32 %v342, %v342
    %v451 = vmul.f32 %v343, %v343
    %v452 = vmul.f32 %v416, %v416
    %v453 = vmul.f32 %v417, %v417
    %v454 = vmul.f32 %v418, %v418
    %v455 = vmul.f32 %v419, %v419
    %v456 = vmul.f32 %v420, %v420
    %v457 = vmul.f32 %v421, %v421
    %v458 = vmul.f32 %v422, %v422
    %v459 = vmul.f32 %v423, %v423
    %v460 = vmul.f32 %v424, %v424
    %v461 = vmul.f32 %v425, %v425
    %v462 = vmul.f32 %v426, %v426
    %v463 = vmul.f32 %v427, %v427
    %v464 = vmul.f32 %v428, %v428
    %v465 = vmul.f32 %v429, %v429
    %v466 = vmul.f32 %v430, %v430
    %v467 = vmul.f32 %v431, %v431
    %v468 = vmul.f32 %v432, %v432
    %v469 = vmul.f32 %v433, %v433
    %488 = vrot.lane.b32.xlu0 %v452, 127
    %v489 = vpop.permute.xlu0 %488
    %490 = vrot.lane.b32.xlu0 %v453, 127
    %v491 = vpop.permute.xlu0 %490
    %492 = vrot.lane.b32.xlu0 %v454, 127
    %v493 = vpop.permute.xlu0 %492
    %494 = vrot.lane.b32.xlu0 %v455, 127
    %v495 = vpop.permute.xlu0 %494
    %496 = vrot.lane.b32.xlu0 %v456, 127
    %v497 = vpop.permute.xlu0 %496
    %498 = vrot.lane.b32.xlu0 %v457, 127
    %v499 = vpop.permute.xlu0 %498
    %500 = vrot.lane.b32.xlu0 %v458, 127
    %v501 = vpop.permute.xlu0 %500
    %502 = vrot.lane.b32.xlu0 %v459, 127
    %v503 = vpop.permute.xlu0 %502
    %504 = vrot.lane.b32.xlu0 %v460, 127
    %v505 = vpop.permute.xlu0 %504
    %506 = vrot.lane.b32.xlu0 %v461, 127
    %v507 = vpop.permute.xlu0 %506
    %508 = vrot.lane.b32.xlu0 %v462, 127
    %v509 = vpop.permute.xlu0 %508
    %510 = vrot.lane.b32.xlu0 %v463, 127
    %v511 = vpop.permute.xlu0 %510
    %512 = vrot.lane.b32.xlu0 %v464, 127
    %v513 = vpop.permute.xlu0 %512
    %514 = vrot.lane.b32.xlu0 %v465, 127
    %v515 = vpop.permute.xlu0 %514
    %516 = vrot.lane.b32.xlu0 %v466, 127
    %v517 = vpop.permute.xlu0 %516
    %518 = vrot.lane.b32.xlu0 %v467, 127
    %v519 = vpop.permute.xlu0 %518
    %520 = vrot.lane.b32.xlu0 %v468, 127
    %v521 = vpop.permute.xlu0 %520
    %522 = vrot.lane.b32.xlu0 %v469, 127
    %v523 = vpop.permute.xlu0 %522
    %v542 = vadd.f32 %v434, %v489
    %v543 = vadd.f32 %v435, %v491
    %v544 = vadd.f32 %v436, %v493
    %v545 = vadd.f32 %v437, %v495
    %v546 = vadd.f32 %v438, %v497
    %v547 = vadd.f32 %v439, %v499
    %v548 = vadd.f32 %v440, %v501
    %v549 = vadd.f32 %v441, %v503
    %v550 = vadd.f32 %v442, %v505
    %v551 = vadd.f32 %v443, %v507
    %v552 = vadd.f32 %v444, %v509
    %v553 = vadd.f32 %v445, %v511
    %v554 = vadd.f32 %v446, %v513
    %v555 = vadd.f32 %v447, %v515
    %v556 = vadd.f32 %v448, %v517
    %v557 = vadd.f32 %v449, %v519
    %v558 = vadd.f32 %v450, %v521
    %v559 = vadd.f32 %v451, %v523
    %v560 = vadd.f32 %v542, 1e-06
    %v561 = vadd.f32 %v543, 1e-06
    %v562 = vadd.f32 %v544, 1e-06
    %v563 = vadd.f32 %v545, 1e-06
    %v564 = vadd.f32 %v546, 1e-06
    %v565 = vadd.f32 %v547, 1e-06
    %v566 = vadd.f32 %v548, 1e-06
    %v567 = vadd.f32 %v549, 1e-06
    %v568 = vadd.f32 %v550, 1e-06
    %v569 = vadd.f32 %v551, 1e-06
    %v570 = vadd.f32 %v552, 1e-06
    %v571 = vadd.f32 %v553, 1e-06
    %v572 = vadd.f32 %v554, 1e-06
    %v573 = vadd.f32 %v555, 1e-06
    %v574 = vadd.f32 %v556, 1e-06
    %v575 = vadd.f32 %v557, 1e-06
    %v576 = vadd.f32 %v558, 1e-06
    %v577 = vadd.f32 %v559, 1e-06
    %v578 = vrsqrt.pop %v560
    %v579 = vmul.f32 %v560, %v578
    %vm580 = vcmp.eq.f32.partialorder %v560, inf
    %v581 = vsel %vm580, %v560, %v579
    %vm582 = vcmp.eq.f32.partialorder %v560, 0.0
    %v583 = vand.u32 %v560, 2147483648
    %v584 = vsel %vm582, %v583, %v581
    %v585 = vrsqrt.pop %v561
    %v586 = vmul.f32 %v561, %v585
    %vm587 = vcmp.eq.f32.partialorder %v561, inf
    %v588 = vsel %vm587, %v561, %v586
    %vm589 = vcmp.eq.f32.partialorder %v561, 0.0
    %v590 = vand.u32 %v561, 2147483648
    %v591 = vsel %vm589, %v590, %v588
    %v592 = vrsqrt.pop %v562
    %v593 = vmul.f32 %v562, %v592
    %vm594 = vcmp.eq.f32.partialorder %v562, inf
    %v595 = vsel %vm594, %v562, %v593
    %vm596 = vcmp.eq.f32.partialorder %v562, 0.0
    %v597 = vand.u32 %v562, 2147483648
    %v598 = vsel %vm596, %v597, %v595
    %v599 = vrsqrt.pop %v563
    %v600 = vmul.f32 %v563, %v599
    %vm601 = vcmp.eq.f32.partialorder %v563, inf
    %v602 = vsel %vm601, %v563, %v600
    %vm603 = vcmp.eq.f32.partialorder %v563, 0.0
    %v604 = vand.u32 %v563, 2147483648
    %v605 = vsel %vm603, %v604, %v602
    %v606 = vrsqrt.pop %v564
    %v607 = vmul.f32 %v564, %v606
    %vm608 = vcmp.eq.f32.partialorder %v564, inf
    %v609 = vsel %vm608, %v564, %v607
    %vm610 = vcmp.eq.f32.partialorder %v564, 0.0
    %v611 = vand.u32 %v564, 2147483648
    %v612 = vsel %vm610, %v611, %v609
    %v613 = vrsqrt.pop %v565
    %v614 = vmul.f32 %v565, %v613
    %vm615 = vcmp.eq.f32.partialorder %v565, inf
    %v616 = vsel %vm615, %v565, %v614
    %vm617 = vcmp.eq.f32.partialorder %v565, 0.0
    %v618 = vand.u32 %v565, 2147483648
    %v619 = vsel %vm617, %v618, %v616
    %v620 = vrsqrt.pop %v566
    %v621 = vmul.f32 %v566, %v620
    %vm622 = vcmp.eq.f32.partialorder %v566, inf
    %v623 = vsel %vm622, %v566, %v621
    %vm624 = vcmp.eq.f32.partialorder %v566, 0.0
    %v625 = vand.u32 %v566, 2147483648
    %v626 = vsel %vm624, %v625, %v623
    %v627 = vrsqrt.pop %v567
    %v628 = vmul.f32 %v567, %v627
    %vm629 = vcmp.eq.f32.partialorder %v567, inf
    %v630 = vsel %vm629, %v567, %v628
    %vm631 = vcmp.eq.f32.partialorder %v567, 0.0
    %v632 = vand.u32 %v567, 2147483648
    %v633 = vsel %vm631, %v632, %v630
    %v634 = vrsqrt.pop %v568
    %v635 = vmul.f32 %v568, %v634
    %vm636 = vcmp.eq.f32.partialorder %v568, inf
    %v637 = vsel %vm636, %v568, %v635
    %vm638 = vcmp.eq.f32.partialorder %v568, 0.0
    %v639 = vand.u32 %v568, 2147483648
    %v640 = vsel %vm638, %v639, %v637
    %v641 = vrsqrt.pop %v569
    %v642 = vmul.f32 %v569, %v641
    %vm643 = vcmp.eq.f32.partialorder %v569, inf
    %v644 = vsel %vm643, %v569, %v642
    %vm645 = vcmp.eq.f32.partialorder %v569, 0.0
    %v646 = vand.u32 %v569, 2147483648
    %v647 = vsel %vm645, %v646, %v644
    %v648 = vrsqrt.pop %v570
    %v649 = vmul.f32 %v570, %v648
    %vm650 = vcmp.eq.f32.partialorder %v570, inf
    %v651 = vsel %vm650, %v570, %v649
    %vm652 = vcmp.eq.f32.partialorder %v570, 0.0
    %v653 = vand.u32 %v570, 2147483648
    %v654 = vsel %vm652, %v653, %v651
    %v655 = vrsqrt.pop %v571
    %v656 = vmul.f32 %v571, %v655
    %vm657 = vcmp.eq.f32.partialorder %v571, inf
    %v658 = vsel %vm657, %v571, %v656
    %vm659 = vcmp.eq.f32.partialorder %v571, 0.0
    %v660 = vand.u32 %v571, 2147483648
    %v661 = vsel %vm659, %v660, %v658
    %v662 = vrsqrt.pop %v572
    %v663 = vmul.f32 %v572, %v662
    %vm664 = vcmp.eq.f32.partialorder %v572, inf
    %v665 = vsel %vm664, %v572, %v663
    %vm666 = vcmp.eq.f32.partialorder %v572, 0.0
    %v667 = vand.u32 %v572, 2147483648
    %v668 = vsel %vm666, %v667, %v665
    %v669 = vrsqrt.pop %v573
    %v670 = vmul.f32 %v573, %v669
    %vm671 = vcmp.eq.f32.partialorder %v573, inf
    %v672 = vsel %vm671, %v573, %v670
    %vm673 = vcmp.eq.f32.partialorder %v573, 0.0
    %v674 = vand.u32 %v573, 2147483648
    %v675 = vsel %vm673, %v674, %v672
    %v676 = vrsqrt.pop %v574
    %v677 = vmul.f32 %v574, %v676
    %vm678 = vcmp.eq.f32.partialorder %v574, inf
    %v679 = vsel %vm678, %v574, %v677
    %vm680 = vcmp.eq.f32.partialorder %v574, 0.0
    %v681 = vand.u32 %v574, 2147483648
    %v682 = vsel %vm680, %v681, %v679
    %v683 = vrsqrt.pop %v575
    %v684 = vmul.f32 %v575, %v683
    %vm685 = vcmp.eq.f32.partialorder %v575, inf
    %v686 = vsel %vm685, %v575, %v684
    %vm687 = vcmp.eq.f32.partialorder %v575, 0.0
    %v688 = vand.u32 %v575, 2147483648
    %v689 = vsel %vm687, %v688, %v686
    %v690 = vrsqrt.pop %v576
    %v691 = vmul.f32 %v576, %v690
    %vm692 = vcmp.eq.f32.partialorder %v576, inf
    %v693 = vsel %vm692, %v576, %v691
    %vm694 = vcmp.eq.f32.partialorder %v576, 0.0
    %v695 = vand.u32 %v576, 2147483648
    %v696 = vsel %vm694, %v695, %v693
    %v697 = vrsqrt.pop %v577
    %v698 = vmul.f32 %v577, %v697
    %vm699 = vcmp.eq.f32.partialorder %v577, inf
    %v700 = vsel %vm699, %v577, %v698
    %vm701 = vcmp.eq.f32.partialorder %v577, 0.0
    %v702 = vand.u32 %v577, 2147483648
    %v703 = vsel %vm701, %v702, %v700
    %722 = vrot.lane.b32.xlu0 %v584, 127
    %v723 = vpop.permute.xlu0 %722
    %724 = vrot.lane.b32.xlu0 %v591, 127
    %v725 = vpop.permute.xlu0 %724
    %726 = vrot.lane.b32.xlu0 %v598, 127
    %v727 = vpop.permute.xlu0 %726
    %728 = vrot.lane.b32.xlu0 %v605, 127
    %v729 = vpop.permute.xlu0 %728
    %730 = vrot.lane.b32.xlu0 %v612, 127
    %v731 = vpop.permute.xlu0 %730
    %732 = vrot.lane.b32.xlu0 %v619, 127
    %v733 = vpop.permute.xlu0 %732
    %734 = vrot.lane.b32.xlu0 %v626, 127
    %v735 = vpop.permute.xlu0 %734
    %736 = vrot.lane.b32.xlu0 %v633, 127
    %v737 = vpop.permute.xlu0 %736
    %738 = vrot.lane.b32.xlu0 %v640, 127
    %v739 = vpop.permute.xlu0 %738
    %740 = vrot.lane.b32.xlu0 %v647, 127
    %v741 = vpop.permute.xlu0 %740
    %742 = vrot.lane.b32.xlu0 %v654, 127
    %v743 = vpop.permute.xlu0 %742
    %744 = vrot.lane.b32.xlu0 %v661, 127
    %v745 = vpop.permute.xlu0 %744
    %746 = vrot.lane.b32.xlu0 %v668, 127
    %v747 = vpop.permute.xlu0 %746
    %748 = vrot.lane.b32.xlu0 %v675, 127
    %v749 = vpop.permute.xlu0 %748
    %750 = vrot.lane.b32.xlu0 %v682, 127
    %v751 = vpop.permute.xlu0 %750
    %752 = vrot.lane.b32.xlu0 %v689, 127
    %v753 = vpop.permute.xlu0 %752
    %754 = vrot.lane.b32.xlu0 %v696, 127
    %v755 = vpop.permute.xlu0 %754
    %756 = vrot.lane.b32.xlu0 %v703, 127
    %v757 = vpop.permute.xlu0 %756
    %vm776 = vcmask 146432
    %777 = vst.msk [vmem:[%s1] sm:$0xff] %vm776, %v723
    %778 = vst.msk [vmem:[%s1 + $0x8] sm:$0xff] %vm776, %v725
    %779 = vst.msk [vmem:[%s1 + $0x10] sm:$0xff] %vm776, %v727
    %780 = vst.msk [vmem:[%s1 + $0x18] sm:$0xff] %vm776, %v729
    %781 = vst.msk [vmem:[%s1 + $0x20] sm:$0xff] %vm776, %v731
    %782 = vst.msk [vmem:[%s1 + $0x28] sm:$0xff] %vm776, %v733
    %783 = vst.msk [vmem:[%s1 + $0x30] sm:$0xff] %vm776, %v735
    %784 = vst.msk [vmem:[%s1 + $0x38] sm:$0xff] %vm776, %v737
    %785 = vst.msk [vmem:[%s1 + $0x40] sm:$0xff] %vm776, %v739
    %786 = vst.msk [vmem:[%s1 + $0x48] sm:$0xff] %vm776, %v741
    %787 = vst.msk [vmem:[%s1 + $0x50] sm:$0xff] %vm776, %v743
    %788 = vst.msk [vmem:[%s1 + $0x58] sm:$0xff] %vm776, %v745
    %789 = vst.msk [vmem:[%s1 + $0x60] sm:$0xff] %vm776, %v747
    %790 = vst.msk [vmem:[%s1 + $0x68] sm:$0xff] %vm776, %v749
    %791 = vst.msk [vmem:[%s1 + $0x70] sm:$0xff] %vm776, %v751
    %792 = vst.msk [vmem:[%s1 + $0x78] sm:$0xff] %vm776, %v753
    %793 = vst.msk [vmem:[%s1 + $0x80] sm:$0xff] %vm776, %v755
    %794 = vst.msk [vmem:[%s1 + $0x88] sm:$0xff] %vm776, %v757
    // Predicated region
    $region18: #{tpu_custom_call.1} parent=1 // pred_check
      _
    $region19: #{tpu_custom_call.1} parent=1 // pred_check_branch
      %796 = sbr.rel (0) target = $region21
    $region20: #{tpu_custom_call.1} parent=1 // pred_region
      _
    $region21: #{tpu_custom_call.1} parent=1 // pred_fallthru
      _
    // Predicated region
    $region22: #{tpu_custom_call.1} parent=1 // pred_check
      _
    $region23: #{tpu_custom_call.1} parent=1 // pred_check_branch
      %798 = sbr.rel (0) target = $region25
    $region24: #{tpu_custom_call.1} parent=1 // pred_region
      _
    $region25: #{tpu_custom_call.1} parent=1 // pred_fallthru
      _
    %799 = vsyncpa [#allocation4], 1

</llo_original>
